<compile_context>
chip_gen: v6e
topology: v6e:2x2x1
jax: 0.10.0
libtpu: 0.0.40
codegen_flags: <defaults>
</compile_context>

<pallas_src>
import functools

import jax
import jax.numpy as jnp
from jax import lax
from jax.experimental import pallas as pl
from jax.experimental.pallas import tpu as pltpu


def _round_up(x: int, m: int) -> int:
    return ((x + m - 1) // m) * m


def _make_kernel(num_sources: int):
    """Build a kernel body for a fixed (static) number of source tensors."""

    def kernel(*refs):
        x_refs = refs[:num_sources]          # K x (TM, IN_p) activation tiles
        w_ref = refs[num_sources]            # (TN, IN_p) weight tile (OUT-major)
        o_ref = refs[num_sources + 1]        # (TM, TN) output tile
        xsum_ref = refs[num_sources + 2]     # (TM, IN_p) f32 scratch

        j = pl.program_id(1)  # OUT-tile index (innermost grid axis)

        # Compute the K-way source sum once per M tile (j == 0) and cache it.
        @pl.when(j == 0)
        def _():
            s = x_refs[0][...].astype(jnp.float32)
            for k in range(1, num_sources):
                s = s + x_refs[k][...].astype(jnp.float32)
            xsum_ref[...] = s

        # Cast back to the input dtype (no-op for f32, bf16 keeps bf16 MXU path).
        x_sum = xsum_ref[...].astype(x_refs[0].dtype)

        # (TM, IN) x (TN, IN) contracted over IN -> (TM, TN), f32 accumulate.
        o_ref[...] = lax.dot_general(
            x_sum,
            w_ref[...],
            dimension_numbers=(((1,), (1,)), ((), ())),
            preferred_element_type=jnp.float32,
        ).astype(o_ref.dtype)

    return kernel


def _pick_tiles(m: int, out: int, in_p: int, k: int, itemsize: int):
    """Choose (TM, TN) that are sublane/lane aligned and fit a conservative VMEM budget."""
    tm = min(256, _round_up(m, 8))
    tn = min(256, max(_round_up(out, 128), 128))

    def vmem_bytes(tm_, tn_):
        # double-buffered inputs + output, plus the f32 sum scratch
        return 2 * (k * tm_ * in_p + tn_ * in_p + tm_ * tn_) * itemsize + tm_ * in_p * 4

    budget = 12 * 1024 * 1024  # stays under v5e's 16 MiB scoped default
    while vmem_bytes(tm, tn) > budget:
        if tm >= tn and tm > 8:
            tm = max(8, tm // 2)
        elif tn > 128:
            tn = max(128, tn // 2)
        else:
            break
    return tm, tn


def synthesiser_linear(contents, weight):
    """contents: sequence of K arrays, each (M, IN); weight: (OUT, IN). Returns (M, OUT)."""
    contents = tuple(contents)
    k = len(contents)
    m, in_features = contents[0].shape
    out_features, in_w = weight.shape
    assert in_w == in_features
    out_dtype = contents[0].dtype

    # Lane-dense padding of the contraction dim (last dim of both operands).
    in_p = max(_round_up(in_features, 128), 128)
    tm, tn = _pick_tiles(m, out_features, in_p, k, jnp.dtype(out_dtype).itemsize)
    m_p = _round_up(m, tm)
    out_p = _round_up(out_features, tn)

    # Zero-pad (no-op when already aligned); zeros contribute nothing to the dot.
    xs = [jnp.pad(x, ((0, m_p - m), (0, in_p - in_features))) for x in contents]
    w_p = jnp.pad(weight, ((0, out_p - out_features), (0, in_p - in_features)))

    grid = (m_p // tm, out_p // tn)  # OUT tiles innermost -> x tile stays resident

    x_spec = pl.BlockSpec((tm, in_p), lambda i, j: (i, 0))
    w_spec = pl.BlockSpec((tn, in_p), lambda i, j: (j, 0))
    o_spec = pl.BlockSpec((tm, tn), lambda i, j: (i, j))

    out_padded = pl.pallas_call(
        _make_kernel(k),
        out_shape=jax.ShapeDtypeStruct((m_p, out_p), out_dtype),
        grid=grid,
        in_specs=[x_spec] * k + [w_spec],
        out_specs=o_spec,
        scratch_shapes=[pltpu.VMEM((tm, in_p), jnp.float32)],
        compiler_params=pltpu.CompilerParams(
            # M tiles can be core-sharded; OUT tiles must run in order per core
            # so the @pl.when(j == 0) sum-cache is always initialized first.
            dimension_semantics=("parallel", "arbitrary"),
        ),
    )(*xs, w_p)

    return out_padded[:m, :out_features]


class SynthesiserLinear:
    """JAX mirror of PyTorchSynthesiserLinear (bias=False)."""

    def __init__(self, in_features: int, out_features: int, content_key: str = "content", *, key):
        # Deterministic init mimicking torch.nn.Linear's kaiming-uniform bound.
        bound = 1.0 / (in_features ** 0.5)
        self.weight = jax.random.uniform(
            key, (out_features, in_features), jnp.float32, minval=-bound, maxval=bound
        )
        self.content_key = content_key

    def __call__(self, inputs):
        # inputs: Dict[str, Dict[str, Array]] (same convention as the torch module)
        contents = tuple(v[self.content_key] for v in inputs.values())
        return {"content": synthesiser_linear(contents, self.weight)}


def _reference(contents, weight):
    summed = functools.reduce(lambda a, b: a + b, contents)
    return summed @ weight.T


if __name__ == "__main__":
    key = jax.random.PRNGKey(0)
    k_w, k1, k2, k3, k_w2, k4, k5 = jax.random.split(key, 7)

    # --- Test 1: shapes matching the original module demo (tiny). ---
    in_features, out_features, batch = 32, 64, 8
    module = SynthesiserLinear(in_features, out_features, key=k_w)
    inputs = {
        "src_a": {"content": jax.random.normal(k1, (batch, in_features), jnp.float32)},
        "src_b": {"content": jax.random.normal(k2, (batch, in_features), jnp.float32)},
        "src_c": {"content": jax.random.normal(k3, (batch, in_features), jnp.float32)},
    }
    out = module(inputs)["content"]
    jax.block_until_ready(out)
    ref = _reference([v["content"] for v in inputs.values()], module.weight)
    assert out.shape == (batch, out_features)
    assert jnp.allclose(out, ref, atol=2e-2, rtol=2e-2)

    # --- Test 2: larger shape to exercise the multi-tile grid, padding and
    #             the per-M-tile sum cache across several OUT tiles. ---
    in2, out2, m2 = 256, 320, 384
    bound = 1.0 / (in2 ** 0.5)
    w2 = jax.random.uniform(k_w2, (out2, in2), jnp.float32, minval=-bound, maxval=bound)
    c_a = jax.random.normal(k4, (m2, in2), jnp.float32)
    c_b = jax.random.normal(k5, (m2, in2), jnp.float32)
    out_big = synthesiser_linear((c_a, c_b), w2)
    jax.block_until_ready(out_big)
    ref_big = _reference((c_a, c_b), w2)
    assert out_big.shape == (m2, out2)
    assert jnp.allclose(out_big, ref_big, atol=2e-2, rtol=2e-2)

    print("KERNEL_OK")
</pallas_src>

<mosaic_0001>
module attributes {stable_mosaic.version = 11 : i64} {
  func.func @kernel(%arg0: i32, %arg1: i32, %arg2: memref<8x128xf32, #tpu.memory_space<vmem>>, %arg3: memref<8x128xf32, #tpu.memory_space<vmem>>, %arg4: memref<8x128xf32, #tpu.memory_space<vmem>>, %arg5: memref<128x128xf32, #tpu.memory_space<vmem>>, %arg6: memref<8x128xf32, #tpu.memory_space<vmem>>, %arg7: memref<8x128xf32, #tpu.memory_space<vmem>>) attributes {dimension_semantics = [#tpu.dimension_semantics<parallel>, #tpu.dimension_semantics<arbitrary>], iteration_bounds = array<i64: 1, 1>, scalar_prefetch = 0 : i64, scratch_operands = 1 : i64, tpu.core_type = #tpu.core_type<tc>, window_params = [{transform_indices = @transform_0, window_bounds = array<i64: 8, 128>}, {transform_indices = @transform_1, window_bounds = array<i64: 8, 128>}, {transform_indices = @transform_2, window_bounds = array<i64: 8, 128>}, {transform_indices = @transform_3, window_bounds = array<i64: 128, 128>}, {transform_indices = @transform_4, window_bounds = array<i64: 8, 128>}]} {
    %c0_i32 = arith.constant 0 : i32
    %0 = arith.cmpi eq, %arg1, %c0_i32 : i32
    %1 = arith.extui %0 : i1 to i32
    %c0_i32_0 = arith.constant 0 : i32
    %2 = arith.cmpi ne, %1, %c0_i32_0 : i32
    scf.if %2 {
      %c0_6 = arith.constant 0 : index
      %c0_7 = arith.constant 0 : index
      %7 = vector.load %arg2[%c0_6, %c0_7] : memref<8x128xf32, #tpu.memory_space<vmem>>, vector<8x128xf32>
      %c0_8 = arith.constant 0 : index
      %c0_9 = arith.constant 0 : index
      %8 = vector.load %arg3[%c0_8, %c0_9] : memref<8x128xf32, #tpu.memory_space<vmem>>, vector<8x128xf32>
      %9 = arith.addf %7, %8 : vector<8x128xf32>
      %c0_10 = arith.constant 0 : index
      %c0_11 = arith.constant 0 : index
      %10 = vector.load %arg4[%c0_10, %c0_11] : memref<8x128xf32, #tpu.memory_space<vmem>>, vector<8x128xf32>
      %11 = arith.addf %9, %10 : vector<8x128xf32>
      %c0_12 = arith.constant 0 : index
      %c0_13 = arith.constant 0 : index
      %12 = vector.load %arg7[%c0_12, %c0_13] : memref<8x128xf32, #tpu.memory_space<vmem>>, vector<8x128xf32>
      tpu.vector_store %arg7[%c0_12, %c0_13], %11 {strides = array<i32>} : memref<8x128xf32, #tpu.memory_space<vmem>>, vector<8x128xf32>,
    } else {
    }
    %c0 = arith.constant 0 : index
    %c0_1 = arith.constant 0 : index
    %3 = vector.load %arg7[%c0, %c0_1] : memref<8x128xf32, #tpu.memory_space<vmem>>, vector<8x128xf32>
    %c0_2 = arith.constant 0 : index
    %c0_3 = arith.constant 0 : index
    %4 = vector.load %arg5[%c0_2, %c0_3] : memref<128x128xf32, #tpu.memory_space<vmem>>, vector<128x128xf32>
    %cst = arith.constant dense<0.000000e+00> : vector<8x128xf32>
    %5 = tpu.matmul %3, %4, %cst {dimension_numbers = #tpu.dot_dimension_numbers<[1], [1], [0], [0], [0, 0, 1, 0], [], []>} : vector<8x128xf32>, vector<128x128xf32>, vector<8x128xf32> -> vector<8x128xf32>
    %c0_4 = arith.constant 0 : index
    %c0_5 = arith.constant 0 : index
    %6 = vector.load %arg6[%c0_4, %c0_5] : memref<8x128xf32, #tpu.memory_space<vmem>>, vector<8x128xf32>
    tpu.vector_store %arg6[%c0_4, %c0_5], %5 {strides = array<i32>} : memref<8x128xf32, #tpu.memory_space<vmem>>, vector<8x128xf32>,
    return
  }
  func.func @transform_0(%arg0: i32, %arg1: i32) -> (i32, i32) {
    %c0_i32 = arith.constant 0 : i32
    %c0_i32_0 = arith.constant 0 : i32
    return %arg0, %c0_i32 : i32, i32
  }
  func.func @transform_1(%arg0: i32, %arg1: i32) -> (i32, i32) {
    %c0_i32 = arith.constant 0 : i32
    %c0_i32_0 = arith.constant 0 : i32
    return %arg0, %c0_i32 : i32, i32
  }
  func.func @transform_2(%arg0: i32, %arg1: i32) -> (i32, i32) {
    %c0_i32 = arith.constant 0 : i32
    %c0_i32_0 = arith.constant 0 : i32
    return %arg0, %c0_i32 : i32, i32
  }
  func.func @transform_3(%arg0: i32, %arg1: i32) -> (i32, i32) {
    %c0_i32 = arith.constant 0 : i32
    %c0_i32_0 = arith.constant 0 : i32
    return %arg1, %c0_i32 : i32, i32
  }
  func.func @transform_4(%arg0: i32, %arg1: i32) -> (i32, i32) {
    %c0_i32 = arith.constant 0 : i32
    return %arg0, %arg1 : i32, i32
  }
}

</mosaic_0001>

<llo_original>
// kernel: tpu_custom_call.1
$region0: #{tpu_custom_call.1}
  #allocation0 [shape = 'u32[]', space=smem, size = 0x4, offset = 0x4, fixed_abs, tag = 'smem constant byte address 0x4 - core index']
  #allocation1 [shape = 'u32[144,128]{1,0:T(1,128)}', space=vmem, size = 0x12000, scoped, tag = 'internal scratch']
  #allocation2 [shape = 'f32[8,128]{1,0:T(8,128)}', space=vmem, size = 0x1000, scoped, tag = 'scratch operand']
  %s0 = inlined_call_operand.hbm [shape: f32[8,128], index: 0, kind: input, shape index: {}]
  %s1 = inlined_call_operand.hbm [shape: f32[8,128], index: 1, kind: input, shape index: {}]
  %s2 = inlined_call_operand.hbm [shape: f32[8,128], index: 2, kind: input, shape index: {}]
  %s3 = inlined_call_operand.hbm [shape: f32[128,128], index: 3, kind: input, shape index: {}]
  %s4 = inlined_call_operand.hbm [shape: f32[8,128], index: 4, kind: output, shape index: {}]
  %s5 = sld [smem:[#allocation0]]
  $region46: #{tpu_custom_call.1} parent=0
    _
  %s7 = ssub.s32 1, %s5
  %s8 = scalar_select 0, %s7, %s5
  $region1: #{tpu_custom_call.1} parent=0
    #allocation3 [shape = 'u8[4096]{0}', space=vmem, size = 0x1000, scoped, tag = 'input window, operand 0, single buffered']
    #allocation4 [shape = 's32[1]{0}', space=sflag, size = 0x4, scoped, tag = 'scoped memory for tpu_custom_call.1']
    #allocation5 [shape = 's32[1]{0}', space=sflag, size = 0x4, scoped, tag = 'scoped memory for tpu_custom_call.1']
    #allocation6 [shape = 'u8[4096]{0}', space=vmem, size = 0x1000, scoped, tag = 'input window, operand 1, single buffered']
    #allocation7 [shape = 's32[1]{0}', space=sflag, size = 0x4, scoped, tag = 'scoped memory for tpu_custom_call.1']
    #allocation8 [shape = 'u8[4096]{0}', space=vmem, size = 0x1000, scoped, tag = 'input window, operand 2, single buffered']
    #allocation9 [shape = 'u8[65536]{0}', space=vmem, size = 0x10000, scoped, tag = 'input window, operand 3, single buffered']
    #allocation10 [shape = 's32[1]{0}', space=sflag, size = 0x4, scoped, tag = 'scoped memory for tpu_custom_call.1']
    #allocation11 [shape = 'u8[4096]{0}', space=vmem, size = 0x1000, scoped, tag = 'output window, operand 0, single buffered']
    %9 = vsyncpa [#allocation4], 0
    %10 = vsyncpa [#allocation7], 0
    %11 = vsyncpa [#allocation10], 0
    %12 = vsyncpa [#allocation5], 0
    // Predicated region
    $region2: #{tpu_custom_call.1} parent=1 // pred_check
      _
    $region3: #{tpu_custom_call.1} parent=1 // pred_check_branch
      %14 = sbr.rel (0) target = $region5
    $region4: #{tpu_custom_call.1} parent=1 // pred_region
      %s16 = ssub.s32 128, 128
      %17 = vsyncadd [#allocation4], %s16
      %s19 = sshll.u32 [#allocation3], 4
      %s20 = int_to_ptr.vmem [resolvable:$true] %s19
      %22 = dma.hbm_to_vmem [thread:$0]  %s0, 128, %s20, [#allocation4]
    $region5: #{tpu_custom_call.1} parent=1 // pred_fallthru
      _
    // Predicated region
    $region6: #{tpu_custom_call.1} parent=1 // pred_check
      _
    $region7: #{tpu_custom_call.1} parent=1 // pred_check_branch
      %24 = sbr.rel (0) target = $region9
    $region8: #{tpu_custom_call.1} parent=1 // pred_region
      %s26 = ssub.s32 128, 128
      %27 = vsyncadd [#allocation7], %s26
      %s29 = sshll.u32 [#allocation6], 4
      %s30 = int_to_ptr.vmem [resolvable:$true] %s29
      %32 = dma.hbm_to_vmem [thread:$0]  %s1, 128, %s30, [#allocation7]
    $region9: #{tpu_custom_call.1} parent=1 // pred_fallthru
      _
    // Predicated region
    $region10: #{tpu_custom_call.1} parent=1 // pred_check
      _
    $region11: #{tpu_custom_call.1} parent=1 // pred_check_branch
      %34 = sbr.rel (0) target = $region13
    $region12: #{tpu_custom_call.1} parent=1 // pred_region
      %s36 = ssub.s32 128, 128
      %37 = vsyncadd [#allocation7], %s36
      %s39 = sshll.u32 [#allocation8], 4
      %s40 = int_to_ptr.vmem [resolvable:$true] %s39
      %42 = dma.hbm_to_vmem [thread:$0]  %s2, 128, %s40, [#allocation7]
    $region13: #{tpu_custom_call.1} parent=1 // pred_fallthru
      _
    // Predicated region
    $region14: #{tpu_custom_call.1} parent=1 // pred_check
      _
    $region15: #{tpu_custom_call.1} parent=1 // pred_check_branch
      %44 = sbr.rel (0) target = $region17
    $region16: #{tpu_custom_call.1} parent=1 // pred_region
      %s46 = ssub.s32 2048, 2048
      %47 = vsyncadd [#allocation10], %s46
      %s48 = sshll.u32 [#allocation9], 4
      %s49 = int_to_ptr.vmem [resolvable:$true] %s48
      %54 = dma.hbm_to_vmem [thread:$0]  %s3, 2048, %s49, [#allocation10], 128, 128, 8
    $region17: #{tpu_custom_call.1} parent=1 // pred_fallthru
      _
    // Predicated region
    $region18: #{tpu_custom_call.1} parent=1 // pred_check
      _
    $region19: #{tpu_custom_call.1} parent=1 // pred_check_branch
      %56 = sbr.rel (0) target = $region21
    $region20: #{tpu_custom_call.1} parent=1 // pred_region
      %57 = dma.done [#allocation4], 128
    $region21: #{tpu_custom_call.1} parent=1 // pred_fallthru
      _
    // Predicated region
    $region22: #{tpu_custom_call.1} parent=1 // pred_check
      _
    $region23: #{tpu_custom_call.1} parent=1 // pred_check_branch
      %59 = sbr.rel (0) target = $region25
    $region24: #{tpu_custom_call.1} parent=1 // pred_region
      %60 = dma.done [#allocation7], 128
    $region25: #{tpu_custom_call.1} parent=1 // pred_fallthru
      _
    // Predicated region
    $region26: #{tpu_custom_call.1} parent=1 // pred_check
      _
    $region27: #{tpu_custom_call.1} parent=1 // pred_check_branch
      %62 = sbr.rel (0) target = $region29
    $region28: #{tpu_custom_call.1} parent=1 // pred_region
      %63 = dma.done [#allocation7], 128
    $region29: #{tpu_custom_call.1} parent=1 // pred_fallthru
      _
    // Predicated region
    $region30: #{tpu_custom_call.1} parent=1 // pred_check
      _
    $region31: #{tpu_custom_call.1} parent=1 // pred_check_branch
      %65 = sbr.rel (0) target = $region33
    $region32: #{tpu_custom_call.1} parent=1 // pred_region
      %66 = dma.done [#allocation10], 2048
    $region33: #{tpu_custom_call.1} parent=1 // pred_fallthru
      _
    %p67 = scmp.eq.s32.totalorder 0, 0
    // Predicated region
    $region34: #{tpu_custom_call.1} parent=1 // pred_check
      %p68 = pneg %p67
    $region35: #{tpu_custom_call.1} parent=1 // pred_check_branch
      %70 = sbr.rel (%p68) target = $region37
    $region36: #{tpu_custom_call.1} parent=1 // pred_region
      %v71 = vld [vmem:[#allocation3] sm:$0xff]
      %v72 = vld [vmem:[#allocation6] sm:$0xff]
      %v73 = vadd.f32 %v71, %v72
      %v74 = vld [vmem:[#allocation8] sm:$0xff]
      %v75 = vadd.f32 %v73, %v74
      %76 = vst [vmem:[#allocation2] sm:$0xff] %v75
    $region37: #{tpu_custom_call.1} parent=1 // pred_fallthru
      _
    %v77 = vld [vmem:[#allocation2] sm:$0xff]
    %v78 = vld [vmem:[#allocation9] sm:$0xff]
    %v79 = vld [vmem:[#allocation9 + $0x8] sm:$0xff]
    %v80 = vld [vmem:[#allocation9 + $0x10] sm:$0xff]
    %v81 = vld [vmem:[#allocation9 + $0x18] sm:$0xff]
    %v82 = vld [vmem:[#allocation9 + $0x20] sm:$0xff]
    %v83 = vld [vmem:[#allocation9 + $0x28] sm:$0xff]
    %v84 = vld [vmem:[#allocation9 + $0x30] sm:$0xff]
    %v85 = vld [vmem:[#allocation9 + $0x38] sm:$0xff]
    %v86 = vld [vmem:[#allocation9 + $0x40] sm:$0xff]
    %v87 = vld [vmem:[#allocation9 + $0x48] sm:$0xff]
    %v88 = vld [vmem:[#allocation9 + $0x50] sm:$0xff]
    %v89 = vld [vmem:[#allocation9 + $0x58] sm:$0xff]
    %v90 = vld [vmem:[#allocation9 + $0x60] sm:$0xff]
    %v91 = vld [vmem:[#allocation9 + $0x68] sm:$0xff]
    %v92 = vld [vmem:[#allocation9 + $0x70] sm:$0xff]
    %v93 = vld [vmem:[#allocation9 + $0x78] sm:$0xff]
    %94 = vmatprep.subr.mxu0 0.0
    %95 = vmatpush1.xpose.msra.mxu0 %v93
    %96 = vmatprep.subr.mxu0 0.0
    %97 = vmatpush1.xpose.msra.mxu0 %v92
    %98 = vmatprep.subr.mxu0 0.0
    %99 = vmatpush1.xpose.msra.mxu0 %v91
    %100 = vmatprep.subr.mxu0 0.0
    %101 = vmatpush1.xpose.msra.mxu0 %v90
    %102 = vmatprep.subr.mxu0 0.0
    %103 = vmatpush1.xpose.msra.mxu0 %v89
    %104 = vmatprep.subr.mxu0 0.0
    %105 = vmatpush1.xpose.msra.mxu0 %v88
    %106 = vmatprep.subr.mxu0 0.0
    %107 = vmatpush1.xpose.msra.mxu0 %v87
    %108 = vmatprep.subr.mxu0 0.0
    %109 = vmatpush1.xpose.msra.mxu0 %v86
    %110 = vmatprep.subr.mxu0 0.0
    %111 = vmatpush1.xpose.msra.mxu0 %v85
    %112 = vmatprep.subr.mxu0 0.0
    %113 = vmatpush1.xpose.msra.mxu0 %v84
    %114 = vmatprep.subr.mxu0 0.0
    %115 = vmatpush1.xpose.msra.mxu0 %v83
    %116 = vmatprep.subr.mxu0 0.0
    %117 = vmatpush1.xpose.msra.mxu0 %v82
    %118 = vmatprep.subr.mxu0 0.0
    %119 = vmatpush1.xpose.msra.mxu0 %v81
    %120 = vmatprep.subr.mxu0 0.0
    %121 = vmatpush1.xpose.msra.mxu0 %v80
    %122 = vmatprep.subr.mxu0 0.0
    %123 = vmatpush1.xpose.msra.mxu0 %v79
    %124 = vmatprep.subr.mxu0 0.0
    %125 = vmatpush1.xpose.msra.mxu0 %v78
    %126 = vmatprep.subr.mxu0 0.0
    %127 = vmatpush2.xpose.msra.mxu0 0.0
    %128 = vmatprep.subr.mxu0 0.0
    %129 = vmatpush2.xpose.msra.mxu0 0.0
    %130 = vmatprep.subr.mxu0 0.0
    %131 = vmatpush2.xpose.msra.mxu0 0.0
    %132 = vmatprep.subr.mxu0 0.0
    %133 = vmatpush2.xpose.msra.mxu0 0.0
    %134 = vmatprep.subr.mxu0 0.0
    %135 = vmatpush2.xpose.msra.mxu0 0.0
    %136 = vmatprep.subr.mxu0 0.0
    %137 = vmatpush2.xpose.msra.mxu0 0.0
    %138 = vmatprep.subr.mxu0 0.0
    %139 = vmatpush2.xpose.msra.mxu0 0.0
    %140 = vmatprep.subr.mxu0 0.0
    %141 = vmatpush2.xpose.msra.mxu0 0.0
    %142 = vmatprep.subr.mxu0 0.0
    %143 = vmatpush2.xpose.msra.mxu0 0.0
    %144 = vmatprep.subr.mxu0 0.0
    %145 = vmatpush2.xpose.msra.mxu0 0.0
    %146 = vmatprep.subr.mxu0 0.0
    %147 = vmatpush2.xpose.msra.mxu0 0.0
    %148 = vmatprep.subr.mxu0 0.0
    %149 = vmatpush2.xpose.msra.mxu0 0.0
    %150 = vmatprep.subr.mxu0 0.0
    %151 = vmatpush2.xpose.msra.mxu0 0.0
    %152 = vmatprep.subr.mxu0 0.0
    %153 = vmatpush2.xpose.msra.mxu0 0.0
    %154 = vmatprep.subr.mxu0 0.0
    %155 = vmatpush2.xpose.msra.mxu0 0.0
    %156 = vmatprep.subr.mxu0 0.0
    %157 = vmatpush2.xpose.msra.mxu0 0.0
    %158 = vmatprep.mubr.f32.mxu0 0.0
    %159 = vmatmul.mubr.f32.gmra.mxu0 %v77
    %v160 = vpop.f32.mrf.mxu0
    %v161 = vadd.f32 0.0, %v160
    %v162 = vpop.f32.mrf.mxu0
    %163 = vdwg.mxu0
    %164 = vst [vmem:[#allocation11] sm:$0xff] %v161
    // Predicated region
    $region38: #{tpu_custom_call.1} parent=1 // pred_check
      _
    $region39: #{tpu_custom_call.1} parent=1 // pred_check_branch
      %166 = sbr.rel (0) target = $region41
    $region40: #{tpu_custom_call.1} parent=1 // pred_region
      %s168 = ssub.s32 128, 128
      %169 = vsyncadd [#allocation5], %s168
      %s171 = sshll.u32 [#allocation11], 4
      %s172 = int_to_ptr.vmem [resolvable:$true] %s171
      %174 = dma.vmem_to_hbm [thread:$0]  %s172, 128, %s4, [#allocation5]
    $region41: #{tpu_custom_call.1} parent=1 // pred_fallthru
      _
    // Predicated region
    $region42: #{tpu_custom_call.1} parent=1 // pred_check
      _
    $region43: #{tpu_custom_call.1} parent=1 // pred_check_branch
      %176 = sbr.rel (0) target = $region45
    $region44: #{tpu_custom_call.1} parent=1 // pred_region
      %177 = dma.done [#allocation5], 128
    $region45: #{tpu_custom_call.1} parent=1 // pred_fallthru
      _
    %178 = vsyncpa [#allocation4], 1
    %179 = vsyncpa [#allocation7], 1
    %180 = vsyncpa [#allocation10], 1
    %181 = vsyncpa [#allocation5], 1

</llo_original>
